<compile_context>
chip_gen: v7x
topology: tpu7x:2x2x1
jax: 0.10.0
libtpu: 0.0.40
codegen_flags: <defaults>
</compile_context>

<pallas_src>
import jax
import jax.numpy as jnp
import numpy as np
from jax.experimental import pallas as pl
from jax.experimental.pallas import tpu as pltpu


# ----------------------------- kernels ------------------------------------ #

def xw_kernel(x_ref, w0_ref, xw_ref):
    """Prologue: xw[rows] = X[rows] @ W0 (computed once, emitted in compute dtype)."""
    xw_ref[...] = jnp.dot(x_ref[...], w0_ref[...],
                          preferred_element_type=jnp.float32).astype(xw_ref.dtype)


def make_gcn_hidden_kernel(n_k, tk):
    """hms[rows] = relu(adj[rows, :] @ xw) @ [Wmu | Wsig], K-tiled over adj columns."""
    partial_k = (n_k % tk) != 0          # static: only mask when tk doesn't divide N

    def kernel(adj_ref, xw_ref, wcat_ref, hms_ref, acc_ref):
        k = pl.program_id(1)

        @pl.when(k == 0)
        def _():
            acc_ref[...] = jnp.zeros_like(acc_ref)

        a = adj_ref[...]
        xw = xw_ref[...]
        if partial_k:
            # Mask stale-VMEM garbage in the padded tail of the last K block
            # (both operands, so 0 * garbage can never produce NaN).
            base = k * tk
            col = base + jax.lax.broadcasted_iota(jnp.int32, a.shape, 1)
            a = jnp.where(col < n_k, a, jnp.zeros_like(a))
            row = base + jax.lax.broadcasted_iota(jnp.int32, xw.shape, 0)
            xw = jnp.where(row < n_k, xw, jnp.zeros_like(xw))
        acc_ref[...] += jnp.dot(a, xw, preferred_element_type=jnp.float32)

        @pl.when(k == pl.num_programs(1) - 1)
        def _():
            hidden = jnp.maximum(acc_ref[...], 0.0).astype(wcat_ref.dtype)
            hms_ref[...] = jnp.dot(hidden, wcat_ref[...],
                                   preferred_element_type=jnp.float32
                                   ).astype(hms_ref.dtype)

    return kernel


def make_sample_z_kernel(h3, n_k, tk):
    """[mean | logstd][rows] = adj[rows, :] @ hms (K-tiled); Z = noise*exp(logstd)+mean."""
    partial_k = (n_k % tk) != 0

    def kernel(adj_ref, hms_ref, noise_ref, z_ref, acc_ref):
        k = pl.program_id(1)

        @pl.when(k == 0)
        def _():
            acc_ref[...] = jnp.zeros_like(acc_ref)

        a = adj_ref[...]
        h = hms_ref[...]
        if partial_k:
            base = k * tk
            col = base + jax.lax.broadcasted_iota(jnp.int32, a.shape, 1)
            a = jnp.where(col < n_k, a, jnp.zeros_like(a))
            row = base + jax.lax.broadcasted_iota(jnp.int32, h.shape, 0)
            h = jnp.where(row < n_k, h, jnp.zeros_like(h))
        acc_ref[...] += jnp.dot(a, h, preferred_element_type=jnp.float32)

        @pl.when(k == pl.num_programs(1) - 1)
        def _():
            ms = acc_ref[...]
            mean = ms[:, :h3]
            logstd = ms[:, h3:]
            # Reparameterization stays in f32 (VPU + EUP exp).
            z_ref[...] = (noise_ref[...].astype(jnp.float32) * jnp.exp(logstd)
                          + mean).astype(z_ref.dtype)

    return kernel


def decode_kernel(zi_ref, zj_ref, a_ref):
    """A_pred tile (i, j) = sigmoid(Z[rows_i] @ Z[rows_j].T); Z.T never materialized."""
    logits = jax.lax.dot_general(
        zi_ref[...], zj_ref[...],
        dimension_numbers=(((1,), (1,)), ((), ())),
        preferred_element_type=jnp.float32)
    a_ref[...] = jax.nn.sigmoid(logits).astype(a_ref.dtype)


# ----------------------------- wrapper ------------------------------------ #

def vgae_forward(X, adj, W0, Wmu, Wsig, noise, *,
                 tm=256, tk=512, tm_dec=256, tn_dec=512,
                 compute_dtype=jnp.float32,
                 vmem_limit_bytes=48 * 1024 * 1024):
    N, din = X.shape
    h1 = W0.shape[1]
    h3 = Wmu.shape[1]

    cd = np.dtype(compute_dtype)
    exact = (cd == np.dtype(np.float32))

    def clamp(t, n):            # full-dim blocks are always legal
        return n if t >= n else t

    tm = clamp(tm, N)
    tk = clamp(tk, N)
    tm_dec = clamp(tm_dec, N)
    tn_dec = clamp(tn_dec, N)

    # Fuse the mu / sigma heads: one weight, one MXU pass for both.
    Wcat = jnp.concatenate([Wmu, Wsig], axis=1).astype(cd)       # (h1, 2*h3)
    # bf16 fast path: cast the dominant N^2 operand ONCE in HBM (read twice).
    adj_c = adj if exact else adj.astype(cd)

    row_grid = pl.cdiv(N, tm)
    k_grid = pl.cdiv(N, tk)

    cp_row = pltpu.CompilerParams(dimension_semantics=("parallel",),
                                  vmem_limit_bytes=vmem_limit_bytes)
    cp_enc = pltpu.CompilerParams(dimension_semantics=("parallel", "arbitrary"),
                                  vmem_limit_bytes=vmem_limit_bytes)
    cp_dec = pltpu.CompilerParams(dimension_semantics=("parallel", "parallel"),
                                  vmem_limit_bytes=vmem_limit_bytes)

    # Stage 0: xw = X @ W0, computed once (emitted in compute dtype).
    xw = pl.pallas_call(
        xw_kernel,
        out_shape=jax.ShapeDtypeStruct((N, h1), cd),
        grid_spec=pltpu.PrefetchScalarGridSpec(
            num_scalar_prefetch=0,
            grid=(row_grid,),
            in_specs=[
                pl.BlockSpec((tm, din), lambda i: (i, 0)),       # X row block
                pl.BlockSpec((din, h1), lambda i: (0, 0)),       # W0
            ],
            out_specs=pl.BlockSpec((tm, h1), lambda i: (i, 0)),
        ),
        compiler_params=cp_row,
    )(X, W0)

    # Stage 1: hms = relu(adj @ xw) @ [Wmu | Wsig], K-tiled over adj columns.
    hms = pl.pallas_call(
        make_gcn_hidden_kernel(N, tk),
        out_shape=jax.ShapeDtypeStruct((N, 2 * h3), cd),
        grid_spec=pltpu.PrefetchScalarGridSpec(
            num_scalar_prefetch=0,
            grid=(row_grid, k_grid),
            in_specs=[
                pl.BlockSpec((tm, tk), lambda i, k: (i, k)),       # adj tile
                pl.BlockSpec((tk, h1), lambda i, k: (k, 0)),       # xw K-slab
                pl.BlockSpec((h1, 2 * h3), lambda i, k: (0, 0)),   # [Wmu|Wsig]
            ],
            out_specs=pl.BlockSpec((tm, 2 * h3), lambda i, k: (i, 0)),
            scratch_shapes=[pltpu.VMEM((tm, h1), jnp.float32)],
        ),
        compiler_params=cp_enc,
    )(adj_c, xw, Wcat)

    # Stage 2: [mean | logstd] = adj @ hms (K-tiled); Z = noise*exp(logstd)+mean.
    z = pl.pallas_call(
        make_sample_z_kernel(h3, N, tk),
        out_shape=jax.ShapeDtypeStruct((N, h3), jnp.float32),
        grid_spec=pltpu.PrefetchScalarGridSpec(
            num_scalar_prefetch=0,
            grid=(row_grid, k_grid),
            in_specs=[
                pl.BlockSpec((tm, tk), lambda i, k: (i, k)),        # adj tile
                pl.BlockSpec((tk, 2 * h3), lambda i, k: (k, 0)),    # hms K-slab
                pl.BlockSpec((tm, h3), lambda i, k: (i, 0)),        # noise rows
            ],
            out_specs=pl.BlockSpec((tm, h3), lambda i, k: (i, 0)),
            scratch_shapes=[pltpu.VMEM((tm, 2 * h3), jnp.float32)],
        ),
        compiler_params=cp_enc,
    )(adj_c, hms, noise)

    # Stage 3: A_pred = sigmoid(Z @ Z.T), lane-dense output tiles, both grid
    # axes parallel, bf16 output on the fast path (largest HBM write).
    z_c = z if exact else z.astype(cd)
    a_dtype = jnp.float32 if exact else cd
    a_pred = pl.pallas_call(
        decode_kernel,
        out_shape=jax.ShapeDtypeStruct((N, N), a_dtype),
        grid_spec=pltpu.PrefetchScalarGridSpec(
            num_scalar_prefetch=0,
            grid=(pl.cdiv(N, tm_dec), pl.cdiv(N, tn_dec)),
            in_specs=[
                pl.BlockSpec((tm_dec, h3), lambda i, j: (i, 0)),    # Z rows i
                pl.BlockSpec((tn_dec, h3), lambda i, j: (j, 0)),    # Z rows j
            ],
            out_specs=pl.BlockSpec((tm_dec, tn_dec), lambda i, j: (i, j)),
        ),
        compiler_params=cp_dec,
    )(z_c, z_c)

    return a_pred, z


# ----------------------------- reference ---------------------------------- #

def glorot_init(key, input_dim, output_dim):
    init_range = np.sqrt(6.0 / (input_dim + output_dim))
    return (jax.random.uniform(key, (input_dim, output_dim), jnp.float32)
            * 2.0 * init_range - init_range)


def vgae_reference(X, adj, W0, Wmu, Wsig, noise):
    hidden = jax.nn.relu(adj @ (X @ W0))
    mean = adj @ (hidden @ Wmu)
    logstd = adj @ (hidden @ Wsig)
    z = noise * jnp.exp(logstd) + mean
    a_pred = jax.nn.sigmoid(z @ z.T)
    return a_pred, z


if __name__ == "__main__":
    # N = 384 so small tiles exercise multi-step row grids, a *partial* K tile
    # (384 % 256 != 0 -> masking path) and partial decode output tiles.
    N = 384           # number of graph nodes
    input_dim = 32    # args.input_dim
    hidden1 = 32      # args.hidden1_dim
    hidden3 = 16      # args.hidden3_dim

    key = jax.random.PRNGKey(0)
    k_x, k_a, k_w0, k_wmu, k_wsig, k_noise = jax.random.split(key, 6)

    X = jax.random.normal(k_x, (N, input_dim), jnp.float32)
    # symmetric, row-normalized dense adjacency (synthetic)
    A_raw = (jax.random.uniform(k_a, (N, N)) < 0.1).astype(jnp.float32)
    adj = (A_raw + A_raw.T) * 0.5 + jnp.eye(N, dtype=jnp.float32)
    adj = adj / jnp.sum(adj, axis=1, keepdims=True)

    W0 = glorot_init(k_w0, input_dim, hidden1)
    Wmu = glorot_init(k_wmu, hidden1, hidden3)
    Wsig = glorot_init(k_wsig, hidden1, hidden3)
    noise = jax.random.normal(k_noise, (N, hidden3), jnp.float32)

    a_ref_np, z_ref_np = vgae_reference(X, adj, W0, Wmu, Wsig, noise)
    a_ref_np = np.asarray(a_ref_np)
    z_ref_np = np.asarray(z_ref_np)

    # Exact f32 path (PyTorch semantics). Small tiles: row grid of 3, K grid
    # of 2 with a masked partial K tile, 3x2 decode grid with partial tiles.
    a_pred, z = vgae_forward(X, adj, W0, Wmu, Wsig, noise,
                             tm=128, tk=256, tm_dec=128, tn_dec=256,
                             compute_dtype=jnp.float32)
    a_pred, z = jax.block_until_ready((a_pred, z))
    np.testing.assert_allclose(np.asarray(z), z_ref_np, rtol=1e-4, atol=1e-4)
    np.testing.assert_allclose(np.asarray(a_pred), a_ref_np, rtol=1e-4, atol=1e-4)

    # bf16 fast path (default big tiles): bf16 adj / xw / hms / Z in HBM,
    # f32 MXU accumulation, bf16 A_pred writeback.
    a_bf, z_bf = vgae_forward(X, adj, W0, Wmu, Wsig, noise,
                              compute_dtype=jnp.bfloat16)
    a_bf, z_bf = jax.block_until_ready((a_bf, z_bf))
    np.testing.assert_allclose(np.asarray(z_bf).astype(np.float32), z_ref_np,
                               rtol=5e-2, atol=5e-2)
    np.testing.assert_allclose(np.asarray(a_bf).astype(np.float32), a_ref_np,
                               rtol=5e-2, atol=5e-2)

    print("KERNEL_OK")
</pallas_src>

<mosaic_0001>
module attributes {stable_mosaic.version = 11 : i64} {
  func.func @xw_kernel(%arg0: i32, %arg1: memref<128x32xf32, #tpu.memory_space<vmem>>, %arg2: memref<32x32xf32, #tpu.memory_space<vmem>>, %arg3: memref<128x32xf32, #tpu.memory_space<vmem>>) attributes {dimension_semantics = [#tpu.dimension_semantics<parallel>], iteration_bounds = array<i64: 3>, scalar_prefetch = 0 : i64, scratch_operands = 0 : i64, tpu.core_type = #tpu.core_type<tc>, window_params = [{transform_indices = @transform_0, window_bounds = array<i64: 128, 32>}, {pipeline_mode = #tpu.pipeline_mode<synchronous>, transform_indices = @transform_1, window_bounds = array<i64: 32, 32>}, {transform_indices = @transform_2, window_bounds = array<i64: 128, 32>}]} {
    %c0 = arith.constant 0 : index
    %c0_0 = arith.constant 0 : index
    %0 = vector.load %arg1[%c0, %c0_0] : memref<128x32xf32, #tpu.memory_space<vmem>>, vector<128x32xf32>
    %c0_1 = arith.constant 0 : index
    %c0_2 = arith.constant 0 : index
    %1 = vector.load %arg2[%c0_1, %c0_2] : memref<32x32xf32, #tpu.memory_space<vmem>>, vector<32x32xf32>
    %cst = arith.constant dense<0.000000e+00> : vector<128x32xf32>
    %2 = tpu.matmul %0, %1, %cst {dimension_numbers = #tpu.dot_dimension_numbers<[1], [0], [0], [1], [0, 0, 1, 1], [], []>} : vector<128x32xf32>, vector<32x32xf32>, vector<128x32xf32> -> vector<128x32xf32>
    %c0_3 = arith.constant 0 : index
    %c0_4 = arith.constant 0 : index
    %3 = vector.load %arg3[%c0_3, %c0_4] : memref<128x32xf32, #tpu.memory_space<vmem>>, vector<128x32xf32>
    tpu.vector_store %arg3[%c0_3, %c0_4], %2 {strides = array<i32>} : memref<128x32xf32, #tpu.memory_space<vmem>>, vector<128x32xf32>,
    return
  }
  func.func @transform_0(%arg0: i32) -> (i32, i32) {
    %c0_i32 = arith.constant 0 : i32
    %c0_i32_0 = arith.constant 0 : i32
    return %arg0, %c0_i32 : i32, i32
  }
  func.func @transform_1(%arg0: i32) -> (i32, i32) {
    %c0_i32 = arith.constant 0 : i32
    %c0_i32_0 = arith.constant 0 : i32
    %c0_i32_1 = arith.constant 0 : i32
    return %c0_i32, %c0_i32_0 : i32, i32
  }
  func.func @transform_2(%arg0: i32) -> (i32, i32) {
    %c0_i32 = arith.constant 0 : i32
    %c0_i32_0 = arith.constant 0 : i32
    return %arg0, %c0_i32 : i32, i32
  }
}

</mosaic_0001>

<llo_original>
// kernel: tpu_custom_call.1
$region0: #{tpu_custom_call.1}
  #allocation0 [shape = 'u32[]', space=smem, size = 0x4, offset = 0x4, fixed_abs, tag = 'smem constant byte address 0x4 - core index']
  #allocation1 [shape = 'u32[144,128]{1,0:T(1,128)}', space=vmem, size = 0x12000, scoped, tag = 'internal scratch']
  %s0 = inlined_call_operand.vmem [shape: f32[384,32], index: 0, kind: input, shape index: {}]
  %s1 = inlined_call_operand.vmem [shape: f32[32,32], index: 1, kind: input, shape index: {}]
  %s2 = inlined_call_operand.vmem [shape: f32[384,32], index: 2, kind: output, shape index: {}]
  %s3 = sld [smem:[#allocation0]]
  $region41: #{tpu_custom_call.1} parent=0
    _
  %s5 = ssub.s32 1, %s3
  %s6 = scalar_select 0, %s5, %s3
  loop: start=0, step=1, limit=5
  $region2: #{tpu_custom_call.1} parent=0 // loop_pre_header
    _
  $region3: #{tpu_custom_call.1} parent=0 // loop_header
    %s8 = sphi 0, %s12
    %p9 = scmp.ge.s32.totalorder %s8, 5
    %s18 = sphi 0, %s20
    %s21 = sphi 0, %s18
    %s22 = sphi 0, %s21
    %s38 = sphi 0, %s22
    %s42 = sphi 0, %s42
    %s44 = sphi 0, %s42
    %s45 = sphi 0, %s44
    %s59 = sphi 0, %s45
    %s65 = sphi 0, %s67
    %s68 = sphi 0, %s65
    %s69 = sphi 0, %s68
    %s85 = sphi 0, %s69
  $region4: #{tpu_custom_call.1} parent=0 // loop_header_branch
    %11 = sbr.rel (%p9) target = $region8
  $region5: #{tpu_custom_call.1} parent=0 // loop_body
    %s13 = ssub.s32 %s8, 1
    %s14 = ssub.s32 %s8, 2
    %s15 = sadd.s32 %s8, 1
    %s16 = ssub.s32 %s8, %s15
    %p17 = scmp.eq.s32.totalorder %s16, 0
    %s19 = sadd.s32 %s18, 1
    %s20 = scalar_select %p17, %s18, %s19
    %p23 = pneg %p17
    %p24 = scmp.eq.s32.totalorder %s8, 2
    %p25 = por %p23, %p24
    %p26 = scmp.ne.s32.totalorder %s18, %s21
    %p27 = scmp.eq.s32.totalorder %s8, 0
    %p28 = por %p26, %p27
    %p29 = scmp.ne.s32.totalorder %s18, %s21
    %p30 = scmp.eq.s32.totalorder %s13, 2
    %p31 = por %p29, %p30
    %p32 = scmp.ne.s32.totalorder %s21, %s22
    %p33 = scmp.eq.s32.totalorder %s13, 0
    %p34 = por %p32, %p33
    %p35 = scmp.ne.s32.totalorder %s21, %s22
    %p36 = scmp.eq.s32.totalorder %s14, 2
    %p37 = por %p35, %p36
    %p39 = scmp.ne.s32.totalorder %s22, %s38
    %p40 = scmp.eq.s32.totalorder %s14, 0
    %p41 = por %p39, %p40
    %s43 = sadd.s32 %s42, 1
    %p46 = scmp.eq.s32.totalorder %s8, 2
    %p47 = scmp.ne.s32.totalorder %s42, %s44
    %p48 = scmp.eq.s32.totalorder %s8, 0
    %p49 = por %p47, %p48
    %p50 = scmp.ne.s32.totalorder %s42, %s44
    %p51 = scmp.eq.s32.totalorder %s13, 2
    %p52 = por %p50, %p51
    %p53 = scmp.ne.s32.totalorder %s44, %s45
    %p54 = scmp.eq.s32.totalorder %s13, 0
    %p55 = por %p53, %p54
    %p56 = scmp.ne.s32.totalorder %s44, %s45
    %p57 = scmp.eq.s32.totalorder %s14, 2
    %p58 = por %p56, %p57
    %p60 = scmp.ne.s32.totalorder %s45, %s59
    %p61 = scmp.eq.s32.totalorder %s14, 0
    %p62 = por %p60, %p61
    %s63 = ssub.s32 %s8, %s15
    %p64 = scmp.eq.s32.totalorder %s63, 0
    %s66 = sadd.s32 %s65, 1
    %s67 = scalar_select %p64, %s65, %s66
    %p70 = pneg %p64
    %p71 = scmp.eq.s32.totalorder %s8, 2
    %p72 = por %p70, %p71
    %p73 = scmp.ne.s32.totalorder %s65, %s68
    %p74 = scmp.eq.s32.totalorder %s8, 0
    %p75 = por %p73, %p74
    %p76 = scmp.ne.s32.totalorder %s65, %s68
    %p77 = scmp.eq.s32.totalorder %s13, 2
    %p78 = por %p76, %p77
    %p79 = scmp.ne.s32.totalorder %s68, %s69
    %p80 = scmp.eq.s32.totalorder %s13, 0
    %p81 = por %p79, %p80
    %p82 = scmp.ne.s32.totalorder %s68, %s69
    %p83 = scmp.eq.s32.totalorder %s14, 2
    %p84 = por %p82, %p83
    %p86 = scmp.ne.s32.totalorder %s69, %s85
    %p87 = scmp.eq.s32.totalorder %s14, 0
    %p88 = por %p86, %p87
    %p89 = scmp.le.s32.totalorder 1, %s8
    %p90 = scmp.lt.s32.totalorder %s8, 4
    %p91 = pnand %p89, %p90
    %p92 = pneg %p91
    // Predicated region
    $region9: #{tpu_custom_call.1} parent=5 // pred_check
      _
    $region10: #{tpu_custom_call.1} parent=5 // pred_check_branch
      %94 = sbr.rel (%p91) target = $region12
    $region11: #{tpu_custom_call.1} parent=5 // pred_region
      %s95 = ssub.s32 %s8, 1
      // Predicated region
      $region13: #{tpu_custom_call.1} parent=11 // pred_check
        %p96 = pneg %p55
      $region14: #{tpu_custom_call.1} parent=11 // pred_check_branch
        %98 = sbr.rel (%p96) target = $region16
      $region15: #{tpu_custom_call.1} parent=11 // pred_region
        _
      $region16: #{tpu_custom_call.1} parent=11 // pred_fallthru
        _
    $region12: #{tpu_custom_call.1} parent=5 // pred_fallthru
      _
    %p99 = scmp.lt.s32.totalorder %s8, 3
    // Predicated region
    $region17: #{tpu_custom_call.1} parent=5 // pred_check
      %p100 = pneg %p99
    $region18: #{tpu_custom_call.1} parent=5 // pred_check_branch
      %102 = sbr.rel (%p100) target = $region20
    $region19: #{tpu_custom_call.1} parent=5 // pred_region
      // Predicated region
      $region21: #{tpu_custom_call.1} parent=19 // pred_check
        %p103 = pneg %p28
      $region22: #{tpu_custom_call.1} parent=19 // pred_check_branch
        %105 = sbr.rel (%p103) target = $region24
      $region23: #{tpu_custom_call.1} parent=19 // pred_region
        %s106 = smul.u32 16, %s8
        %p107 = scmp.lt.s32.totalorder %s106, 47
        %s108 = scalar_select %p107, %s106, 47
        %s109 = smul.addr %s108, 8
        %s110 = scalar_lea.vmem %s0, %s109
        %s111 = smul.u32 16, %s8
      $region24: #{tpu_custom_call.1} parent=19 // pred_fallthru
        _
    $region20: #{tpu_custom_call.1} parent=5 // pred_fallthru
      _
    %p112 = scmp.le.s32.totalorder 1, %s8
    %p113 = scmp.lt.s32.totalorder %s8, 4
    %p114 = pnand %p112, %p113
    %p115 = pneg %p114
    // Predicated region
    $region25: #{tpu_custom_call.1} parent=5 // pred_check
      _
    $region26: #{tpu_custom_call.1} parent=5 // pred_check_branch
      %117 = sbr.rel (%p114) target = $region28
    $region27: #{tpu_custom_call.1} parent=5 // pred_region
      %s118 = ssub.s32 %s8, 1
      %s119 = smul.u32 16, %s13
      %p120 = scmp.lt.s32.totalorder %s119, 47
      %s121 = scalar_select %p120, %s119, 47
      %s122 = smul.addr %s121, 8
      %s123 = scalar_lea.vmem %s0, %s122
      %p124 = pneg %p34
      %p125 = pneg %p31
      %p126 = pneg %p55
      %p127 = pneg %p52
      %p128 = pneg %p81
      %p129 = pneg %p78
      %s130 = smul.u32 16, %s13
      %p131 = scmp.lt.s32.totalorder %s130, 47
      %s132 = scalar_select %p131, %s130, 47
      %s133 = smul.addr %s132, 8
      %s134 = scalar_lea.vmem %s2, %s133
      %s135 = smul.u32 16, %s13
      %p136 = scmp.lt.s32.totalorder %s135, 47
      %s137 = scalar_select %p136, %s135, 47
      %s138 = smul.addr %s137, 8
      %s139 = scalar_lea.vmem %s0, %s138
      %s140 = smul.u32 16, %s13
      %s141 = smul.u32 16, %s13
      %p142 = scmp.lt.s32.totalorder %s141, 47
      %s143 = scalar_select %p142, %s141, 47
      %s144 = smul.addr %s143, 8
      %s145 = scalar_lea.vmem %s2, %s144
      %s146 = smul.u32 16, %s13
      %v147 = vld [vmem:[%s139] sm:$0xff]
      %v148 = vld [vmem:[%s139 + $0x8] sm:$0xff]
      %v149 = vld [vmem:[%s139 + $0x10] sm:$0xff]
      %v150 = vld [vmem:[%s139 + $0x18] sm:$0xff]
      %v151 = vld [vmem:[%s139 + $0x20] sm:$0xff]
      %v152 = vld [vmem:[%s139 + $0x28] sm:$0xff]
      %v153 = vld [vmem:[%s139 + $0x30] sm:$0xff]
      %v154 = vld [vmem:[%s139 + $0x38] sm:$0xff]
      %v155 = vld [vmem:[%s139 + $0x40] sm:$0xff]
      %v156 = vld [vmem:[%s139 + $0x48] sm:$0xff]
      %v157 = vld [vmem:[%s139 + $0x50] sm:$0xff]
      %v158 = vld [vmem:[%s139 + $0x58] sm:$0xff]
      %v159 = vld [vmem:[%s139 + $0x60] sm:$0xff]
      %v160 = vld [vmem:[%s139 + $0x68] sm:$0xff]
      %v161 = vld [vmem:[%s139 + $0x70] sm:$0xff]
      %v162 = vld [vmem:[%s139 + $0x78] sm:$0xff]
      %v163 = vld [vmem:[%s1] sm:$0xff]
      %v164 = vld [vmem:[%s1 + $0x8] sm:$0xff]
      %v165 = vld [vmem:[%s1 + $0x10] sm:$0xff]
      %v166 = vld [vmem:[%s1 + $0x18] sm:$0xff]
      %vm167 = vcmask 261120
      %v169 = vsel %vm167, %v147, 0
      %v172 = vsel %vm167, %v148, 0
      %v175 = vsel %vm167, %v149, 0
      %v178 = vsel %vm167, %v150, 0
      %v181 = vsel %vm167, %v151, 0
      %v184 = vsel %vm167, %v152, 0
      %v187 = vsel %vm167, %v153, 0
      %v190 = vsel %vm167, %v154, 0
      %v193 = vsel %vm167, %v155, 0
      %v196 = vsel %vm167, %v156, 0
      %v199 = vsel %vm167, %v157, 0
      %v202 = vsel %vm167, %v158, 0
      %v205 = vsel %vm167, %v159, 0
      %v208 = vsel %vm167, %v160, 0
      %v211 = vsel %vm167, %v161, 0
      %v214 = vsel %vm167, %v162, 0
      %216 = vmatprep.subr.mxu0 0.0
      %217 = vmatpush1.msra.mxu0 %v163
      %218 = vmatprep.subr.mxu0 0.0
      %219 = vmatpush1.msra.mxu0 %v164
      %220 = vmatprep.subr.mxu0 0.0
      %221 = vmatpush1.msra.mxu0 %v165
      %222 = vmatprep.subr.mxu0 0.0
      %223 = vmatpush1.msra.mxu0 %v166
      %224 = vmatprep.subr.mxu0 0.0
      %225 = vmatpush1.msra.mxu0 0.0
      %226 = vmatprep.subr.mxu0 0.0
      %227 = vmatpush1.msra.mxu0 0.0
      %228 = vmatprep.subr.mxu0 0.0
      %229 = vmatpush1.msra.mxu0 0.0
      %230 = vmatprep.subr.mxu0 0.0
      %231 = vmatpush1.msra.mxu0 0.0
      %232 = vmatprep.subr.mxu0 0.0
      %233 = vmatpush1.msra.mxu0 0.0
      %234 = vmatprep.subr.mxu0 0.0
      %235 = vmatpush1.msra.mxu0 0.0
      %236 = vmatprep.subr.mxu0 0.0
      %237 = vmatpush1.msra.mxu0 0.0
      %238 = vmatprep.subr.mxu0 0.0
      %239 = vmatpush1.msra.mxu0 0.0
      %240 = vmatprep.subr.mxu0 0.0
      %241 = vmatpush1.msra.mxu0 0.0
      %242 = vmatprep.subr.mxu0 0.0
      %243 = vmatpush1.msra.mxu0 0.0
      %244 = vmatprep.subr.mxu0 0.0
      %245 = vmatpush1.msra.mxu0 0.0
      %246 = vmatprep.subr.mxu0 0.0
      %247 = vmatpush1.msra.mxu0 0.0
      %248 = vmatprep.subr.mxu0 0.0
      %249 = vmatpush1.msra.mxu0 0.0
      %250 = vmatprep.subr.mxu0 0.0
      %251 = vmatpush1.msra.mxu0 0.0
      %252 = vmatprep.subr.mxu0 0.0
      %253 = vmatpush1.msra.mxu0 0.0
      %254 = vmatprep.subr.mxu0 0.0
      %255 = vmatpush1.msra.mxu0 0.0
      %256 = vmatprep.subr.mxu0 0.0
      %257 = vmatpush1.msra.mxu0 0.0
      %258 = vmatprep.subr.mxu0 0.0
      %259 = vmatpush1.msra.mxu0 0.0
      %260 = vmatprep.subr.mxu0 0.0
      %261 = vmatpush1.msra.mxu0 0.0
      %262 = vmatprep.subr.mxu0 0.0
      %263 = vmatpush1.msra.mxu0 0.0
      %264 = vmatprep.subr.mxu0 0.0
      %265 = vmatpush1.msra.mxu0 0.0
      %266 = vmatprep.subr.mxu0 0.0
      %267 = vmatpush1.msra.mxu0 0.0
      %268 = vmatprep.subr.mxu0 0.0
      %269 = vmatpush1.msra.mxu0 0.0
      %270 = vmatprep.subr.mxu0 0.0
      %271 = vmatpush1.msra.mxu0 0.0
      %272 = vmatprep.subr.mxu0 0.0
      %273 = vmatpush1.msra.mxu0 0.0
      %274 = vmatprep.subr.mxu0 0.0
      %275 = vmatpush1.msra.mxu0 0.0
      %276 = vmatprep.subr.mxu0 0.0
      %277 = vmatpush1.msra.mxu0 0.0
      %278 = vmatprep.subr.mxu0 0.0
      %279 = vmatpush1.msra.mxu0 0.0
      %280 = vmatprep.mubr.f32.mxu0 0.0
      %281 = vmatmul.mubr.f32.gmra.mrb[0].mxu0 %v169
      %v282 = vpop.f32.mrb[0].mxu0
      %v283 = vadd.f32 0.0, %v282
      %v284 = vpop.f32.mrb[0].mxu0
      %285 = vmatprep.mubr.f32.mxu0 0.0
      %286 = vmatmul.mubr.f32.gmra.mrb[0].mxu0 %v172
      %v287 = vpop.f32.mrb[0].mxu0
      %v288 = vadd.f32 0.0, %v287
      %v289 = vpop.f32.mrb[0].mxu0
      %290 = vmatprep.mubr.f32.mxu0 0.0
      %291 = vmatmul.mubr.f32.gmra.mrb[0].mxu0 %v175
      %v292 = vpop.f32.mrb[0].mxu0
      %v293 = vadd.f32 0.0, %v292
      %v294 = vpop.f32.mrb[0].mxu0
      %295 = vmatprep.mubr.f32.mxu0 0.0
      %296 = vmatmul.mubr.f32.gmra.mrb[0].mxu0 %v178
      %v297 = vpop.f32.mrb[0].mxu0
      %v298 = vadd.f32 0.0, %v297
      %v299 = vpop.f32.mrb[0].mxu0
      %300 = vmatprep.mubr.f32.mxu0 0.0
      %301 = vmatmul.mubr.f32.gmra.mrb[0].mxu0 %v181
      %v302 = vpop.f32.mrb[0].mxu0
      %v303 = vadd.f32 0.0, %v302
      %v304 = vpop.f32.mrb[0].mxu0
      %305 = vmatprep.mubr.f32.mxu0 0.0
      %306 = vmatmul.mubr.f32.gmra.mrb[0].mxu0 %v184
      %v307 = vpop.f32.mrb[0].mxu0
      %v308 = vadd.f32 0.0, %v307
      %v309 = vpop.f32.mrb[0].mxu0
      %310 = vmatprep.mubr.f32.mxu0 0.0
      %311 = vmatmul.mubr.f32.gmra.mrb[0].mxu0 %v187
      %v312 = vpop.f32.mrb[0].mxu0
      %v313 = vadd.f32 0.0, %v312
      %v314 = vpop.f32.mrb[0].mxu0
      %315 = vmatprep.mubr.f32.mxu0 0.0
      %316 = vmatmul.mubr.f32.gmra.mrb[0].mxu0 %v190
      %v317 = vpop.f32.mrb[0].mxu0
      %v318 = vadd.f32 0.0, %v317
      %v319 = vpop.f32.mrb[0].mxu0
      %320 = vmatprep.mubr.f32.mxu0 0.0
      %321 = vmatmul.mubr.f32.gmra.mrb[0].mxu0 %v193
      %v322 = vpop.f32.mrb[0].mxu0
      %v323 = vadd.f32 0.0, %v322
      %v324 = vpop.f32.mrb[0].mxu0
      %325 = vmatprep.mubr.f32.mxu0 0.0
      %326 = vmatmul.mubr.f32.gmra.mrb[0].mxu0 %v196
      %v327 = vpop.f32.mrb[0].mxu0
      %v328 = vadd.f32 0.0, %v327
      %v329 = vpop.f32.mrb[0].mxu0
      %330 = vmatprep.mubr.f32.mxu0 0.0
      %331 = vmatmul.mubr.f32.gmra.mrb[0].mxu0 %v199
      %v332 = vpop.f32.mrb[0].mxu0
      %v333 = vadd.f32 0.0, %v332
      %v334 = vpop.f32.mrb[0].mxu0
      %335 = vmatprep.mubr.f32.mxu0 0.0
      %336 = vmatmul.mubr.f32.gmra.mrb[0].mxu0 %v202
      %v337 = vpop.f32.mrb[0].mxu0
      %v338 = vadd.f32 0.0, %v337
      %v339 = vpop.f32.mrb[0].mxu0
      %340 = vmatprep.mubr.f32.mxu0 0.0
      %341 = vmatmul.mubr.f32.gmra.mrb[0].mxu0 %v205
      %v342 = vpop.f32.mrb[0].mxu0
      %v343 = vadd.f32 0.0, %v342
      %v344 = vpop.f32.mrb[0].mxu0
      %345 = vmatprep.mubr.f32.mxu0 0.0
      %346 = vmatmul.mubr.f32.gmra.mrb[0].mxu0 %v208
      %v347 = vpop.f32.mrb[0].mxu0
      %v348 = vadd.f32 0.0, %v347
      %v349 = vpop.f32.mrb[0].mxu0
      %350 = vmatprep.mubr.f32.mxu0 0.0
      %351 = vmatmul.mubr.f32.gmra.mrb[0].mxu0 %v211
      %v352 = vpop.f32.mrb[0].mxu0
      %v353 = vadd.f32 0.0, %v352
      %v354 = vpop.f32.mrb[0].mxu0
      %355 = vmatprep.mubr.f32.mxu0 0.0
      %356 = vmatmul.mubr.f32.gmra.mrb[0].mxu0 %v214
      %v357 = vpop.f32.mrb[0].mxu0
      %v358 = vadd.f32 0.0, %v357
      %v359 = vpop.f32.mrb[0].mxu0
      %360 = vdwg.mxu0
      %361 = vst.msk [vmem:[%s145] sm:$0xff] %vm167, %v283
      %362 = vst.msk [vmem:[%s145 + $0x8] sm:$0xff] %vm167, %v288
      %363 = vst.msk [vmem:[%s145 + $0x10] sm:$0xff] %vm167, %v293
      %364 = vst.msk [vmem:[%s145 + $0x18] sm:$0xff] %vm167, %v298
      %365 = vst.msk [vmem:[%s145 + $0x20] sm:$0xff] %vm167, %v303
      %366 = vst.msk [vmem:[%s145 + $0x28] sm:$0xff] %vm167, %v308
      %367 = vst.msk [vmem:[%s145 + $0x30] sm:$0xff] %vm167, %v313
      %368 = vst.msk [vmem:[%s145 + $0x38] sm:$0xff] %vm167, %v318
      %369 = vst.msk [vmem:[%s145 + $0x40] sm:$0xff] %vm167, %v323
      %370 = vst.msk [vmem:[%s145 + $0x48] sm:$0xff] %vm167, %v328
      %371 = vst.msk [vmem:[%s145 + $0x50] sm:$0xff] %vm167, %v333
      %372 = vst.msk [vmem:[%s145 + $0x58] sm:$0xff] %vm167, %v338
      %373 = vst.msk [vmem:[%s145 + $0x60] sm:$0xff] %vm167, %v343
      %374 = vst.msk [vmem:[%s145 + $0x68] sm:$0xff] %vm167, %v348
      %375 = vst.msk [vmem:[%s145 + $0x70] sm:$0xff] %vm167, %v353
      %376 = vst.msk [vmem:[%s145 + $0x78] sm:$0xff] %vm167, %v358
      %s377 = smul.u32 16, %s13
      %p378 = scmp.lt.s32.totalorder %s377, 47
      %s379 = scalar_select %p378, %s377, 47
      %s380 = smul.addr %s379, 8
      %s381 = scalar_lea.vmem %s2, %s380
      // Predicated region
      $region29: #{tpu_custom_call.1} parent=27 // pred_check
        %p382 = pneg %p78
      $region30: #{tpu_custom_call.1} parent=27 // pred_check_branch
        %384 = sbr.rel (%p382) target = $region32
      $region31: #{tpu_custom_call.1} parent=27 // pred_region
        %s385 = smul.u32 16, %s13
      $region32: #{tpu_custom_call.1} parent=27 // pred_fallthru
        _
    $region28: #{tpu_custom_call.1} parent=5 // pred_fallthru
      _
    %p386 = scmp.le.s32.totalorder 2, %s8
    // Predicated region
    $region33: #{tpu_custom_call.1} parent=5 // pred_check
      %p387 = pneg %p386
    $region34: #{tpu_custom_call.1} parent=5 // pred_check_branch
      %389 = sbr.rel (%p387) target = $region36
    $region35: #{tpu_custom_call.1} parent=5 // pred_region
      %s390 = ssub.s32 %s8, 2
      // Predicated region
      $region37: #{tpu_custom_call.1} parent=35 // pred_check
        %p391 = pneg %p84
      $region38: #{tpu_custom_call.1} parent=35 // pred_check_branch
        %393 = sbr.rel (%p391) target = $region40
      $region39: #{tpu_custom_call.1} parent=35 // pred_region
        %s394 = smul.u32 16, %s14
        %p395 = scmp.lt.s32.totalorder %s394, 47
        %s396 = scalar_select %p395, %s394, 47
        %s397 = smul.addr %s396, 8
        %s398 = scalar_lea.vmem %s2, %s397
      $region40: #{tpu_custom_call.1} parent=35 // pred_fallthru
        _
    $region36: #{tpu_custom_call.1} parent=5 // pred_fallthru
      _
  $region6: #{tpu_custom_call.1} parent=0 // loop_footer
    %s12 = sadd.s32 1, %s8
  $region7: #{tpu_custom_call.1} parent=0 // loop_footer_branch
    %7 = sbr.rel target = $region3
  $region8: #{tpu_custom_call.1} parent=0 // loop_exit
    _

</llo_original>
